<compile_context>
chip_gen: v7x
topology: tpu7x:2x2x1
jax: 0.10.0
libtpu: 0.0.40
codegen_flags: <defaults>
</compile_context>

<pallas_src>
import jax
import jax.numpy as jnp
from jax.experimental import pallas as pl
from jax.experimental.pallas import tpu as pltpu


def _my_bn_kernel(x_ref, o_ref):
    # Block = (1, 1, tile_c, H*W). Grid axis 1 indexes the two channel halves:
    # half 0 -> subtract per-channel spatial mean, half 1 -> passthrough copy.
    @pl.when(pl.program_id(1) == 0)
    def _subtract_mean():
        x = x_ref[...]
        # Accumulate the lane reduction in f32; subtract in the native dtype
        # (no full-block upcast round-trip for sub-32-bit inputs).
        mean = jnp.mean(x, axis=-1, keepdims=True, dtype=jnp.float32)
        o_ref[...] = (x - mean.astype(x.dtype)).astype(o_ref.dtype)

    @pl.when(pl.program_id(1) == 1)
    def _passthrough():
        o_ref[...] = x_ref[...]


def _pick_tile_c(half, hw, itemsize, target_bytes=2 << 20):
    """Largest divisor of `half` that is a multiple of 8 and keeps one block
    under ~2 MiB (so 2 bufs x (in+out) x block stays far below scoped VMEM on
    every generation). Falls back to the full half, which is always a
    layout-legal block extent."""
    for t in range(half, 0, -1):
        if half % t == 0 and t % 8 == 0 and t * hw * itemsize <= target_bytes:
            return t
    return half


def my_bn(x):
    """Pallas implementation of My_Bn.forward. x: (N, C, H, W), NCHW."""
    N, C, H, W = x.shape
    assert C % 2 == 0, "channel count must be even (torch.split(x, C//2))"
    half = C // 2
    HW = H * W
    itemsize = jnp.dtype(x.dtype).itemsize

    # Zero-cost views: lane axis becomes H*W (lane-dense stores), and the
    # channel axis splits into (half_id, channel-within-half) so the
    # subtract/passthrough decision is a grid index, not a per-element mask.
    x4 = x.reshape(N, 2, half, HW)

    tile_c = _pick_tile_c(half, HW, itemsize)
    grid = (N, 2, half // tile_c)

    out4 = pl.pallas_call(
        _my_bn_kernel,
        out_shape=jax.ShapeDtypeStruct((N, 2, half, HW), x.dtype),
        grid_spec=pltpu.PrefetchScalarGridSpec(
            num_scalar_prefetch=0,
            grid=grid,
            in_specs=[pl.BlockSpec((1, 1, tile_c, HW),
                                   lambda n, h, c: (n, h, c, 0))],
            out_specs=pl.BlockSpec((1, 1, tile_c, HW),
                                   lambda n, h, c: (n, h, c, 0)),
        ),
        compiler_params=pltpu.CompilerParams(
            dimension_semantics=("parallel", "parallel", "parallel"),
        ),
        cost_estimate=pl.CostEstimate(
            flops=2 * N * half * HW,           # reduce + subtract, lower half only
            transcendentals=0,
            bytes_accessed=2 * N * C * HW * itemsize,
        ),
    )(x4)

    # NOTE: if the caller can donate x, adding input_output_aliases={0: 0} and
    # restricting the grid to the lower half would skip the passthrough
    # read+write entirely (~2x less HBM traffic on this mem-bound op).
    return out4.reshape(N, C, H, W)


def _my_bn_ref(x):
    # pure-JAX reference mirroring the PyTorch semantics
    C = x.shape[1]
    x1, x2 = x[:, : C // 2], x[:, C // 2:]
    x1 = x1 - jnp.mean(x1, axis=(2, 3), keepdims=True)
    return jnp.concatenate([x1, x2], axis=1)


if __name__ == "__main__":
    key = jax.random.PRNGKey(0)

    # Small shape consistent with the module (NCHW).
    shapes = [(2, 4, 16, 16), (2, 32, 8, 16)]
    for i, shape in enumerate(shapes):
        k = jax.random.fold_in(key, i)
        x = jax.random.normal(k, shape, dtype=jnp.float32)

        out = jax.block_until_ready(my_bn(x))
        ref = _my_bn_ref(x)

        assert out.shape == ref.shape and out.dtype == ref.dtype
        assert jnp.allclose(out, ref, atol=1e-5, rtol=1e-5)

    print("KERNEL_OK")
</pallas_src>

<mosaic_0001>
module attributes {stable_mosaic.version = 11 : i64} {
  func.func @_my_bn_kernel(%arg0: i32, %arg1: i32, %arg2: i32, %arg3: memref<1x1x2x256xf32, #tpu.memory_space<vmem>>, %arg4: memref<1x1x2x256xf32, #tpu.memory_space<vmem>>) attributes {dimension_semantics = [#tpu.dimension_semantics<parallel>, #tpu.dimension_semantics<parallel>, #tpu.dimension_semantics<parallel>], iteration_bounds = array<i64: 2, 2, 1>, scalar_prefetch = 0 : i64, scratch_operands = 0 : i64, tpu.core_type = #tpu.core_type<tc>, window_params = [{transform_indices = @transform_0, window_bounds = array<i64: 1, 1, 2, 256>}, {transform_indices = @transform_1, window_bounds = array<i64: 1, 1, 2, 256>}]} {
    %c0_i32 = arith.constant 0 : i32
    %0 = arith.cmpi eq, %arg1, %c0_i32 : i32
    %1 = arith.extui %0 : i1 to i32
    %c0_i32_0 = arith.constant 0 : i32
    %2 = arith.cmpi ne, %1, %c0_i32_0 : i32
    scf.if %2 {
      %c0 = arith.constant 0 : index
      %c0_2 = arith.constant 0 : index
      %c0_3 = arith.constant 0 : index
      %c0_4 = arith.constant 0 : index
      %6 = vector.load %arg3[%c0, %c0_2, %c0_3, %c0_4] : memref<1x1x2x256xf32, #tpu.memory_space<vmem>>, vector<1x1x2x256xf32>
      %cst = arith.constant dense<0.000000e+00> : vector<1x1x2xf32>
      %7 = vector.multi_reduction <add>, %6, %cst [3] : vector<1x1x2x256xf32> to vector<1x1x2xf32>
      %8 = vector.shape_cast %7 : vector<1x1x2xf32> to vector<1x1x2x1xf32>
      %cst_5 = arith.constant 2.560000e+02 : f32
      %9 = vector.broadcast %cst_5 : f32 to vector<1x1x2x1xf32>
      %10 = arith.divf %8, %9 : vector<1x1x2x1xf32>
      %11 = vector.broadcast %10 : vector<1x1x2x1xf32> to vector<1x1x2x256xf32>
      %12 = arith.subf %6, %11 : vector<1x1x2x256xf32>
      %c0_6 = arith.constant 0 : index
      %c0_7 = arith.constant 0 : index
      %c0_8 = arith.constant 0 : index
      %c0_9 = arith.constant 0 : index
      %13 = vector.load %arg4[%c0_6, %c0_7, %c0_8, %c0_9] : memref<1x1x2x256xf32, #tpu.memory_space<vmem>>, vector<1x1x2x256xf32>
      tpu.vector_store %arg4[%c0_6, %c0_7, %c0_8, %c0_9], %12 {strides = array<i32>} : memref<1x1x2x256xf32, #tpu.memory_space<vmem>>, vector<1x1x2x256xf32>,
    } else {
    }
    %c1_i32 = arith.constant 1 : i32
    %3 = arith.cmpi eq, %arg1, %c1_i32 : i32
    %4 = arith.extui %3 : i1 to i32
    %c0_i32_1 = arith.constant 0 : i32
    %5 = arith.cmpi ne, %4, %c0_i32_1 : i32
    scf.if %5 {
      %c0 = arith.constant 0 : index
      %c0_2 = arith.constant 0 : index
      %c0_3 = arith.constant 0 : index
      %c0_4 = arith.constant 0 : index
      %6 = vector.load %arg3[%c0, %c0_2, %c0_3, %c0_4] : memref<1x1x2x256xf32, #tpu.memory_space<vmem>>, vector<1x1x2x256xf32>
      %c0_5 = arith.constant 0 : index
      %c0_6 = arith.constant 0 : index
      %c0_7 = arith.constant 0 : index
      %c0_8 = arith.constant 0 : index
      %7 = vector.load %arg4[%c0_5, %c0_6, %c0_7, %c0_8] : memref<1x1x2x256xf32, #tpu.memory_space<vmem>>, vector<1x1x2x256xf32>
      tpu.vector_store %arg4[%c0_5, %c0_6, %c0_7, %c0_8], %6 {strides = array<i32>} : memref<1x1x2x256xf32, #tpu.memory_space<vmem>>, vector<1x1x2x256xf32>,
    } else {
    }
    return
  }
  func.func @transform_0(%arg0: i32, %arg1: i32, %arg2: i32) -> (i32, i32, i32, i32) {
    %c0_i32 = arith.constant 0 : i32
    %c0_i32_0 = arith.constant 0 : i32
    return %arg0, %arg1, %arg2, %c0_i32 : i32, i32, i32, i32
  }
  func.func @transform_1(%arg0: i32, %arg1: i32, %arg2: i32) -> (i32, i32, i32, i32) {
    %c0_i32 = arith.constant 0 : i32
    %c0_i32_0 = arith.constant 0 : i32
    return %arg0, %arg1, %arg2, %c0_i32 : i32, i32, i32, i32
  }
}

</mosaic_0001>

<llo_original>
// kernel: tpu_custom_call.1
$region0: #{tpu_custom_call.1}
  #allocation0 [shape = 'u32[]', space=smem, size = 0x4, offset = 0x4, fixed_abs, tag = 'smem constant byte address 0x4 - core index']
  #allocation1 [shape = 'u32[144,128]{1,0:T(1,128)}', space=vmem, size = 0x12000, scoped, tag = 'internal scratch']
  %s0 = inlined_call_operand.hbm [shape: f32[2,2,2,256], index: 0, kind: input, shape index: {}]
  %s1 = inlined_call_operand.hbm [shape: f32[2,2,2,256], index: 1, kind: output, shape index: {}]
  %s2 = sld [smem:[#allocation0]]
  $region49: #{tpu_custom_call.1} parent=0
    _
  %s4 = ssub.s32 1, %s2
  %s5 = scalar_select 0, %s4, %s2
  $region1: #{tpu_custom_call.1} parent=0
    #allocation2 [shape = 'u8[4096]{0}', space=vmem, size = 0x1000, scoped, tag = 'input window, operand 0']
    #allocation3 [shape = 's32[2]{0}', space=sflag, size = 0x8, scoped, tag = 'scoped memory for tpu_custom_call.1']
    #allocation4 [shape = 's32[2]{0}', space=sflag, size = 0x8, scoped, tag = 'scoped memory for tpu_custom_call.1']
    #allocation5 [shape = 'u8[4096]{0}', space=vmem, size = 0x1000, scoped, tag = 'output window, operand 0']
    %6 = vsyncpa [#allocation3], 0
    %s7 = scalar_lea.sflag [#allocation3], 1
    %8 = vsyncpa %s7, 0
    %9 = vsyncpa [#allocation4], 0
    %s10 = scalar_lea.sflag [#allocation4], 1
    %11 = vsyncpa %s10, 0
    loop: start=0, step=1, limit=6
    $region2: #{tpu_custom_call.1} parent=1 // loop_pre_header
      _
    $region3: #{tpu_custom_call.1} parent=1 // loop_header
      %s13 = sphi 0, %s17
      %p14 = scmp.ge.s32.totalorder %s13, 6
      %s20 = sphi 0, %s39
      %s21 = sphi 0, %s35
      %s22 = sphi 0, %s31
      %s23 = sphi 0, %s20
      %s24 = sphi 0, %s21
      %s25 = sphi 0, %s22
      %s26 = sphi 0, %s23
      %s27 = sphi 0, %s24
      %s28 = sphi 0, %s25
      %s46 = sphi 0, %s48
      %s49 = sphi 0, %s46
      %s50 = sphi 0, %s49
      %s66 = sphi 0, %s50
      %s76 = sphi 0, %s78
      %s79 = sphi 0, %s76
      %s80 = sphi 0, %s79
      %s96 = sphi 0, %s80
    $region4: #{tpu_custom_call.1} parent=1 // loop_header_branch
      %16 = sbr.rel (%p14) target = $region8
    $region5: #{tpu_custom_call.1} parent=1 // loop_body
      %s18 = ssub.s32 %s13, 1
      %s19 = ssub.s32 %s13, 2
      %s29 = sadd.s32 1, %s22
      %p30 = scmp.ge.s32.totalorder %s29, 1
      %s31 = scalar_select %p30, 0, %s29
      %s32 = sadd.s32 1, %s21
      %s33 = scalar_select %p30, %s32, %s21
      %p34 = scmp.ge.s32.totalorder %s33, 2
      %s35 = scalar_select %p34, 0, %s33
      %s36 = sadd.s32 1, %s20
      %s37 = scalar_select %p34, %s36, %s20
      %p38 = scmp.ge.s32.totalorder %s37, 2
      %s39 = scalar_select %p38, 0, %s37
      %s40 = ssub.s32 %s20, %s39
      %s41 = ssub.s32 %s21, %s35
      %s42 = sor.u32 %s40, %s41
      %s43 = ssub.s32 %s22, %s31
      %s44 = sor.u32 %s42, %s43
      %p45 = scmp.eq.s32.totalorder %s44, 0
      %s47 = sadd.s32 %s46, 1
      %s48 = scalar_select %p45, %s46, %s47
      %p51 = pneg %p45
      %p52 = scmp.eq.s32.totalorder %s13, 3
      %p53 = por %p51, %p52
      %p54 = scmp.ne.s32.totalorder %s46, %s49
      %p55 = scmp.eq.s32.totalorder %s13, 0
      %p56 = por %p54, %p55
      %p57 = scmp.ne.s32.totalorder %s46, %s49
      %p58 = scmp.eq.s32.totalorder %s18, 3
      %p59 = por %p57, %p58
      %p60 = scmp.ne.s32.totalorder %s49, %s50
      %p61 = scmp.eq.s32.totalorder %s18, 0
      %p62 = por %p60, %p61
      %p63 = scmp.ne.s32.totalorder %s49, %s50
      %p64 = scmp.eq.s32.totalorder %s19, 3
      %p65 = por %p63, %p64
      %p67 = scmp.ne.s32.totalorder %s50, %s66
      %p68 = scmp.eq.s32.totalorder %s19, 0
      %p69 = por %p67, %p68
      %s70 = ssub.s32 %s20, %s39
      %s71 = ssub.s32 %s21, %s35
      %s72 = sor.u32 %s70, %s71
      %s73 = ssub.s32 %s22, %s31
      %s74 = sor.u32 %s72, %s73
      %p75 = scmp.eq.s32.totalorder %s74, 0
      %s77 = sadd.s32 %s76, 1
      %s78 = scalar_select %p75, %s76, %s77
      %p81 = pneg %p75
      %p82 = scmp.eq.s32.totalorder %s13, 3
      %p83 = por %p81, %p82
      %p84 = scmp.ne.s32.totalorder %s76, %s79
      %p85 = scmp.eq.s32.totalorder %s13, 0
      %p86 = por %p84, %p85
      %p87 = scmp.ne.s32.totalorder %s76, %s79
      %p88 = scmp.eq.s32.totalorder %s18, 3
      %p89 = por %p87, %p88
      %p90 = scmp.ne.s32.totalorder %s79, %s80
      %p91 = scmp.eq.s32.totalorder %s18, 0
      %p92 = por %p90, %p91
      %p93 = scmp.ne.s32.totalorder %s79, %s80
      %p94 = scmp.eq.s32.totalorder %s19, 3
      %p95 = por %p93, %p94
      %p97 = scmp.ne.s32.totalorder %s80, %s96
      %p98 = scmp.eq.s32.totalorder %s19, 0
      %p99 = por %p97, %p98
      %p100 = scmp.le.s32.totalorder 1, %s13
      %p101 = scmp.lt.s32.totalorder %s13, 5
      %p102 = pnand %p100, %p101
      %p103 = pneg %p102
      // Predicated region
      $region9: #{tpu_custom_call.1} parent=5 // pred_check
        _
      $region10: #{tpu_custom_call.1} parent=5 // pred_check_branch
        %105 = sbr.rel (%p102) target = $region12
      $region11: #{tpu_custom_call.1} parent=5 // pred_region
        %s106 = ssub.s32 %s13, 1
      $region12: #{tpu_custom_call.1} parent=5 // pred_fallthru
        _
      %p107 = scmp.lt.s32.totalorder %s13, 4
      // Predicated region
      $region13: #{tpu_custom_call.1} parent=5 // pred_check
        %p108 = pneg %p107
      $region14: #{tpu_custom_call.1} parent=5 // pred_check_branch
        %110 = sbr.rel (%p108) target = $region16
      $region15: #{tpu_custom_call.1} parent=5 // pred_region
        // Predicated region
        $region17: #{tpu_custom_call.1} parent=15 // pred_check
          %p111 = pneg %p56
        $region18: #{tpu_custom_call.1} parent=15 // pred_check_branch
          %113 = sbr.rel (%p111) target = $region20
        $region19: #{tpu_custom_call.1} parent=15 // pred_region
          %s114 = sand.u32 %s46, 1
          %s115 = scalar_lea.sflag [#allocation3], %s114
          %s116 = sand.u32 %s46, 1
          %s117 = smul.addr %s116, 4
          %s118 = scalar_lea.vmem [#allocation2], %s117
          %s120 = ssub.s32 64, 64
          %121 = vsyncadd %s115, %s120
          %s122 = smul.addr %s22, 2
          %s123 = smul.addr %s21, 2
          %s124 = sadd.s32 %s122, %s123
          %s125 = smul.addr %s20, 4
          %s126 = sadd.s32 %s124, %s125
          %s127 = smul.addr %s126, 32
          %s128 = scalar_lea.hbm %s0, %s127
          %s130 = sshll.u32 %s118, 4
          %s131 = int_to_ptr.vmem [resolvable:$true] %s130
          %133 = dma.hbm_to_vmem [thread:$0]  %s128, 64, %s131, %s115
        $region20: #{tpu_custom_call.1} parent=15 // pred_fallthru
          _
      $region16: #{tpu_custom_call.1} parent=5 // pred_fallthru
        _
      %p134 = scmp.le.s32.totalorder 1, %s13
      %p135 = scmp.lt.s32.totalorder %s13, 5
      %p136 = pnand %p134, %p135
      %p137 = pneg %p136
      // Predicated region
      $region21: #{tpu_custom_call.1} parent=5 // pred_check
        _
      $region22: #{tpu_custom_call.1} parent=5 // pred_check_branch
        %139 = sbr.rel (%p136) target = $region24
      $region23: #{tpu_custom_call.1} parent=5 // pred_region
        %s140 = ssub.s32 %s13, 1
        %s141 = sand.u32 %s49, 1
        %s142 = scalar_lea.sflag [#allocation3], %s141
        %s143 = sand.u32 %s49, 1
        %s144 = smul.addr %s143, 4
        %s145 = scalar_lea.vmem [#allocation2], %s144
        // Predicated region
        $region25: #{tpu_custom_call.1} parent=23 // pred_check
          %p146 = pneg %p62
        $region26: #{tpu_custom_call.1} parent=23 // pred_check_branch
          %148 = sbr.rel (%p146) target = $region28
        $region27: #{tpu_custom_call.1} parent=23 // pred_region
          %149 = dma.done %s142, 64
        $region28: #{tpu_custom_call.1} parent=23 // pred_fallthru
          _
        %s150 = sand.u32 %s49, 1
        %s151 = scalar_lea.sflag [#allocation3], %s150
        %s152 = sand.u32 %s49, 1
        %s153 = smul.addr %s152, 4
        %s154 = scalar_lea.vmem [#allocation2], %s153
        %p155 = pneg %p62
        %p156 = pneg %p59
        %p157 = pneg %p92
        %p158 = pneg %p89
        %s159 = sand.u32 %s79, 1
        %s160 = scalar_lea.sflag [#allocation4], %s159
        %s161 = sand.u32 %s79, 1
        %s162 = smul.addr %s161, 4
        %s163 = scalar_lea.vmem [#allocation5], %s162
        %p164 = scmp.eq.s32.totalorder %s24, 0
        // Predicated region
        $region29: #{tpu_custom_call.1} parent=23 // pred_check
          %p165 = pneg %p164
        $region30: #{tpu_custom_call.1} parent=23 // pred_check_branch
          %167 = sbr.rel (%p165) target = $region32
        $region31: #{tpu_custom_call.1} parent=23 // pred_region
          %v168 = vld [vmem:[%s145] sm:$0xf]
          %v171 = vunpack.c.l.s4 1983009808
          %v172 = vunpack.c.0.s8 %v171
          %v173 = vlaneseq
          %v174 = vshrl.u32 %v173, 7
          %v175 = vsub.s32 %v172, %v174
          %v176 = vrot.slane %v168, %v175
          %v177 = vcombine.high %v176, %v176
          %vm180 = vcmask 1041408
          %v181 = vsel %vm180, %v176, 0.0
          %v182 = vsel %vm180, %v177, 0.0
          %v183 = vadd.f32 %v181, %v182
          %184 = vadd.xlane.f32.xlu0 %v183
          %v185 = vpop.xlane.xlu0 %184
          %v186 = vrcp.pop 256.0
          %v187 = vmul.f32 %v185, %v186
          %v190 = vunpack.c.l.s4 269488144
          %v191 = vunpack.c.0.s8 %v190
          %v192 = vlaneseq
          %v193 = vshrl.u32 %v192, 7
          %v194 = vsub.s32 %v191, %v193
          %v195 = vrot.slane %v187, %v194
          %v197 = vsub.f32 %v168, %v195
          %198 = vst [vmem:[%s163] sm:$0xf] %v197
        $region32: #{tpu_custom_call.1} parent=23 // pred_fallthru
          _
        %p199 = scmp.eq.s32.totalorder %s24, 1
        // Predicated region
        $region33: #{tpu_custom_call.1} parent=23 // pred_check
          %p200 = pneg %p199
        $region34: #{tpu_custom_call.1} parent=23 // pred_check_branch
          %202 = sbr.rel (%p200) target = $region36
        $region35: #{tpu_custom_call.1} parent=23 // pred_region
          %v203 = vld [vmem:[%s145] sm:$0xf]
          %204 = vst [vmem:[%s163] sm:$0xf] %v203
        $region36: #{tpu_custom_call.1} parent=23 // pred_fallthru
          _
        %s205 = sand.u32 %s79, 1
        %s206 = scalar_lea.sflag [#allocation4], %s205
        %s207 = sand.u32 %s79, 1
        %s208 = smul.addr %s207, 4
        %s209 = scalar_lea.vmem [#allocation5], %s208
        // Predicated region
        $region37: #{tpu_custom_call.1} parent=23 // pred_check
          %p210 = pneg %p89
        $region38: #{tpu_custom_call.1} parent=23 // pred_check_branch
          %212 = sbr.rel (%p210) target = $region40
        $region39: #{tpu_custom_call.1} parent=23 // pred_region
          %s214 = ssub.s32 64, 64
          %215 = vsyncadd %s206, %s214
          %s216 = smul.addr %s25, 2
          %s217 = smul.addr %s24, 2
          %s218 = sadd.s32 %s216, %s217
          %s219 = smul.addr %s23, 4
          %s220 = sadd.s32 %s218, %s219
          %s221 = smul.addr %s220, 32
          %s222 = scalar_lea.hbm %s1, %s221
          %s224 = sshll.u32 %s209, 4
          %s225 = int_to_ptr.vmem [resolvable:$true] %s224
          %227 = dma.vmem_to_hbm [thread:$0]  %s225, 64, %s222, %s206
        $region40: #{tpu_custom_call.1} parent=23 // pred_fallthru
          _
      $region24: #{tpu_custom_call.1} parent=5 // pred_fallthru
        _
      %p228 = scmp.le.s32.totalorder 2, %s13
      // Predicated region
      $region41: #{tpu_custom_call.1} parent=5 // pred_check
        %p229 = pneg %p228
      $region42: #{tpu_custom_call.1} parent=5 // pred_check_branch
        %231 = sbr.rel (%p229) target = $region44
      $region43: #{tpu_custom_call.1} parent=5 // pred_region
        %s232 = ssub.s32 %s13, 2
        // Predicated region
        $region45: #{tpu_custom_call.1} parent=43 // pred_check
          %p233 = pneg %p95
        $region46: #{tpu_custom_call.1} parent=43 // pred_check_branch
          %235 = sbr.rel (%p233) target = $region48
        $region47: #{tpu_custom_call.1} parent=43 // pred_region
          %s236 = sand.u32 %s80, 1
          %s237 = scalar_lea.sflag [#allocation4], %s236
          %s238 = sand.u32 %s80, 1
          %s239 = smul.addr %s238, 4
          %s240 = scalar_lea.vmem [#allocation5], %s239
          %241 = dma.done %s237, 64
        $region48: #{tpu_custom_call.1} parent=43 // pred_fallthru
          _
      $region44: #{tpu_custom_call.1} parent=5 // pred_fallthru
        _
    $region6: #{tpu_custom_call.1} parent=1 // loop_footer
      %s17 = sadd.s32 1, %s13
    $region7: #{tpu_custom_call.1} parent=1 // loop_footer_branch
      %12 = sbr.rel target = $region3
    $region8: #{tpu_custom_call.1} parent=1 // loop_exit
      _
    %242 = vsyncpa [#allocation3], 1
    %s243 = scalar_lea.sflag [#allocation3], 1
    %244 = vsyncpa %s243, 1
    %245 = vsyncpa [#allocation4], 1
    %s246 = scalar_lea.sflag [#allocation4], 1
    %247 = vsyncpa %s246, 1

</llo_original>
